<compile_context>
chip_gen: v7x
topology: tpu7x:2x2x1
jax: 0.10.0
libtpu: 0.0.40
codegen_flags: <defaults>
</compile_context>

<pallas_src>
import functools

import jax
import jax.numpy as jnp
from jax.experimental import pallas as pl
from jax.experimental.pallas import tpu as pltpu

_HIGHEST = jax.lax.Precision.HIGHEST


# ------------------------- fused whole-slab kernel (small C*N) -------------------------

def _channel_attn_fused_kernel(beta_ref, x_ref, o_ref):
    """Entire forward for one batch element: Gram -> softmax -> apply -> residual."""
    x = x_ref[0]                                                    # (C, N) f32
    beta = beta_ref[0]

    # Gram matrix A = feat_a @ feat_a^T: contract the spatial axis of both
    # operands directly (transposed-RHS MXU matmul, no VMEM relayout of x).
    a = jax.lax.dot_general(
        x, x, dimension_numbers=(((1,), (1,)), ((), ())),
        precision=_HIGHEST, preferred_element_type=jnp.float32)     # (C, C)

    # softmax(rowmax(A) - A) == exp(rowmin(A) - A) / sum  (shift invariance):
    # one cross-lane reduction, all exp arguments <= 0 (numerically safe).
    z = jnp.min(a, axis=-1, keepdims=True) - a
    p = jnp.exp(z)
    denom = jnp.sum(p, axis=-1, keepdims=True)
    p = p * pl.reciprocal(denom, approx=True)                       # EUP, not VALU divide

    feat_e = jnp.dot(p, x, precision=_HIGHEST,
                     preferred_element_type=jnp.float32)            # (C, N)
    o_ref[0] = beta * feat_e + x


def _forward_fused(x_flat, beta_arr):
    B, C, N = x_flat.shape
    slab = 4 * C * N                                 # one f32 (C, N) slab, bytes
    # 2x in + 2x out (double-buffered) + feat_e + (C, C) temps + headroom.
    need = 5 * slab + 16 * C * C + (2 << 20)
    vmem_limit = int(min(max(need, 32 << 20), 64 << 20))
    return pl.pallas_call(
        _channel_attn_fused_kernel,
        out_shape=jax.ShapeDtypeStruct((B, C, N), jnp.float32),
        grid=(B,),
        in_specs=[
            pl.BlockSpec(memory_space=pltpu.MemorySpace.SMEM),      # beta scalar
            pl.BlockSpec((1, C, N), lambda b: (b, 0, 0)),           # x batch slab
        ],
        out_specs=pl.BlockSpec((1, C, N), lambda b: (b, 0, 0)),
        compiler_params=pltpu.CompilerParams(
            dimension_semantics=("parallel",),
            vmem_limit_bytes=vmem_limit),
        cost_estimate=pl.CostEstimate(
            flops=int(4 * B * C * C * N),
            transcendentals=int(B * C * C),
            bytes_accessed=int(8 * B * C * N)),
    )(beta_arr, x_flat)


# ---------------------- two-pass N-tiled kernels (large C*N slabs) ---------------------

def _gram_softmax_kernel(x_ref, att_ref):
    """Pass 1: accumulate the (C, C) Gram over spatial tiles; softmax at the end."""
    t = pl.program_id(1)

    @pl.when(t == 0)
    def _init():
        att_ref[...] = jnp.zeros_like(att_ref)

    x = x_ref[0]                                                    # (C, TN)
    att_ref[0] = att_ref[0] + jax.lax.dot_general(
        x, x, dimension_numbers=(((1,), (1,)), ((), ())),
        precision=_HIGHEST, preferred_element_type=jnp.float32)

    @pl.when(t == pl.num_programs(1) - 1)
    def _finalize():
        a = att_ref[0]
        z = jnp.min(a, axis=-1, keepdims=True) - a
        p = jnp.exp(z)
        denom = jnp.sum(p, axis=-1, keepdims=True)
        att_ref[0] = p * pl.reciprocal(denom, approx=True)


def _attn_apply_kernel(beta_ref, att_ref, x_ref, o_ref):
    """Pass 2: out_tile = beta * (attention @ x_tile) + x_tile."""
    x = x_ref[0]                                                    # (C, TN)
    feat_e = jnp.dot(att_ref[0], x, precision=_HIGHEST,
                     preferred_element_type=jnp.float32)
    o_ref[0] = beta_ref[0] * feat_e + x


def _forward_tiled(x_flat, beta_arr, tn):
    B, C, N = x_flat.shape
    n_tiles = N // tn
    tile = 4 * C * tn
    vmem1 = int(min(max(4 * tile + 24 * C * C + (2 << 20), 32 << 20), 64 << 20))
    vmem2 = int(min(max(6 * tile + 16 * C * C + (2 << 20), 32 << 20), 64 << 20))

    att = pl.pallas_call(
        _gram_softmax_kernel,
        out_shape=jax.ShapeDtypeStruct((B, C, C), jnp.float32),
        grid=(B, n_tiles),
        in_specs=[pl.BlockSpec((1, C, tn), lambda b, t: (b, 0, t))],
        out_specs=pl.BlockSpec((1, C, C), lambda b, t: (b, 0, 0)),  # resident accumulator
        compiler_params=pltpu.CompilerParams(
            dimension_semantics=("parallel", "arbitrary"),
            vmem_limit_bytes=vmem1),
        cost_estimate=pl.CostEstimate(
            flops=int(2 * B * C * C * N),
            transcendentals=int(B * C * C),
            bytes_accessed=int(4 * B * C * N + 4 * B * C * C)),
    )(x_flat)

    out = pl.pallas_call(
        _attn_apply_kernel,
        out_shape=jax.ShapeDtypeStruct((B, C, N), jnp.float32),
        grid=(B, n_tiles),
        in_specs=[
            pl.BlockSpec(memory_space=pltpu.MemorySpace.SMEM),      # beta scalar
            pl.BlockSpec((1, C, C), lambda b, t: (b, 0, 0)),        # attention
            pl.BlockSpec((1, C, tn), lambda b, t: (b, 0, t)),       # x tile
        ],
        out_specs=pl.BlockSpec((1, C, tn), lambda b, t: (b, 0, t)),
        compiler_params=pltpu.CompilerParams(
            dimension_semantics=("parallel", "parallel"),
            vmem_limit_bytes=vmem2),
        cost_estimate=pl.CostEstimate(
            flops=int(2 * B * C * C * N),
            transcendentals=0,
            bytes_accessed=int(8 * B * C * N + 4 * B * C * C)),
    )(beta_arr, att, x_flat)
    return out


# ---------------------------------- module wrapper --------------------------------------

def _pick_spatial_tile(n):
    for tn in (2048, 1024, 512, 256, 128):
        if n % tn == 0:
            return tn
    return None


@functools.partial(jax.jit, static_argnames=("force_tiled", "tile_n"))
def channel_attention_forward(x, beta, force_tiled=False, tile_n=None):
    """Forward of _ChannelAttentionModule.

    x: (B, C, H, W) float32 (NCHW as in PyTorch).  beta: scalar parameter.
    Returns (B, C, H, W) float32.
    """
    B, C, H, W = x.shape
    N = H * W
    x_flat = x.reshape(B, C, N)            # the module's .view — contiguous, no transpose
    beta_arr = jnp.asarray(beta, jnp.float32).reshape(1)

    tn = tile_n if tile_n is not None else _pick_spatial_tile(N)
    slab_bytes = 4 * C * N
    # Whole-slab fused path while ~5 double-buffered slabs stay well under VMEM
    # (v7x has only 64 MiB); otherwise stream spatial tiles via the two-pass path.
    want_tiled = force_tiled or (5 * slab_bytes > (40 << 20))

    if want_tiled and tn is not None and N % tn == 0:
        out_flat = _forward_tiled(x_flat, beta_arr, tn)
    else:
        # TODO(synk): if the slab is too big AND N has no multiple-of-128 divisor,
        # pad N up to a multiple of 128 and take the tiled path instead of this one.
        out_flat = _forward_fused(x_flat, beta_arr)
    return out_flat.reshape(B, C, H, W)


# -------------------------------- pure-JAX reference -------------------------------------

def reference_forward(x, beta):
    """Literal jnp transcription of the PyTorch forward (f32, HIGHEST precision)."""
    B, C, H, W = x.shape
    feat_a = x.reshape(B, C, H * W)
    feat_a_t = jnp.transpose(feat_a, (0, 2, 1))
    attention = jnp.matmul(feat_a, feat_a_t, precision=_HIGHEST)
    attention_new = jnp.max(attention, axis=-1, keepdims=True) - attention
    attention = jax.nn.softmax(attention_new, axis=-1)
    feat_e = jnp.matmul(attention, feat_a, precision=_HIGHEST).reshape(B, C, H, W)
    return beta * feat_e + x


# --------------------------------------- main --------------------------------------------

if __name__ == "__main__":
    B, C, H, W = 2, 4, 16, 16

    key = jax.random.PRNGKey(0)
    x = (0.25 * jax.random.normal(key, (B, C, H, W))).astype(jnp.float32)

    # TODO(synk): the PyTorch module initialises beta = 0, which collapses the
    # forward to out == x; a non-zero deterministic beta exercises the full
    # attention data path (forward semantics are unchanged).
    beta = jnp.float32(0.75)

    ref = jax.block_until_ready(reference_forward(x, beta))

    # Small shapes take the fused whole-slab path...
    out_fused = jax.block_until_ready(channel_attention_forward(x, beta))
    # ...and also exercise the N-tiled two-pass path (2 spatial tiles of 128).
    out_tiled = jax.block_until_ready(
        channel_attention_forward(x, beta, force_tiled=True, tile_n=128))

    assert out_fused.shape == (B, C, H, W)
    assert out_tiled.shape == (B, C, H, W)
    err_f = float(jnp.max(jnp.abs(out_fused - ref)))
    err_t = float(jnp.max(jnp.abs(out_tiled - ref)))
    assert jnp.allclose(out_fused, ref, rtol=2e-3, atol=2e-3), (
        f"fused path mismatch vs reference (max abs err {err_f:.3e})")
    assert jnp.allclose(out_tiled, ref, rtol=2e-3, atol=2e-3), (
        f"tiled path mismatch vs reference (max abs err {err_t:.3e})")

    print("KERNEL_OK")
</pallas_src>

<mosaic_0001>
module attributes {stable_mosaic.version = 11 : i64} {
  func.func @_channel_attn_fused_kernel(%arg0: i32, %arg1: memref<1xf32, #tpu.memory_space<smem>>, %arg2: memref<1x4x256xf32, #tpu.memory_space<vmem>>, %arg3: memref<1x4x256xf32, #tpu.memory_space<vmem>>) attributes {dimension_semantics = [#tpu.dimension_semantics<parallel>], iteration_bounds = array<i64: 2>, scalar_prefetch = 0 : i64, scratch_operands = 0 : i64, tpu.core_type = #tpu.core_type<tc>, window_params = [{transform_indices = @transform_0, window_bounds = array<i64: 1>}, {transform_indices = @transform_1, window_bounds = array<i64: 1, 4, 256>}, {transform_indices = @transform_2, window_bounds = array<i64: 1, 4, 256>}]} {
    %c0 = arith.constant 0 : index
    %c0_0 = arith.constant 0 : index
    %c0_1 = arith.constant 0 : index
    %0 = vector.load %arg2[%c0, %c0_0, %c0_1] : memref<1x4x256xf32, #tpu.memory_space<vmem>>, vector<1x4x256xf32>
    %1 = vector.shape_cast %0 : vector<1x4x256xf32> to vector<4x256xf32>
    %c0_2 = arith.constant 0 : index
    %2 = memref.load %arg1[%c0_2] : memref<1xf32, #tpu.memory_space<smem>>
    %cst = arith.constant dense<0.000000e+00> : vector<4x4xf32>
    %3 = tpu.matmul %1, %1, %cst {dimension_numbers = #tpu.dot_dimension_numbers<[1], [1], [0], [0], [0, 0, 1, 0], [], []>, precision = #tpu.contract_precision<fp32>} : vector<4x256xf32>, vector<4x256xf32>, vector<4x4xf32> -> vector<4x4xf32>
    %cst_3 = arith.constant dense<0x7F800000> : vector<4xf32>
    %4 = vector.multi_reduction <minimumf>, %3, %cst_3 [1] : vector<4x4xf32> to vector<4xf32>
    %5 = vector.shape_cast %4 : vector<4xf32> to vector<4x1xf32>
    %6 = vector.broadcast %5 : vector<4x1xf32> to vector<4x4xf32>
    %7 = arith.subf %6, %3 : vector<4x4xf32>
    %8 = math.exp %7 : vector<4x4xf32>
    %cst_4 = arith.constant dense<0.000000e+00> : vector<4xf32>
    %9 = vector.multi_reduction <add>, %8, %cst_4 [1] : vector<4x4xf32> to vector<4xf32>
    %10 = vector.shape_cast %9 : vector<4xf32> to vector<4x1xf32>
    %11 = tpu.reciprocal %10 {approx = true} : vector<4x1xf32> -> vector<4x1xf32>
    %12 = vector.broadcast %11 : vector<4x1xf32> to vector<4x4xf32>
    %13 = arith.mulf %8, %12 : vector<4x4xf32>
    %cst_5 = arith.constant dense<0.000000e+00> : vector<4x256xf32>
    %14 = tpu.matmul %13, %1, %cst_5 {dimension_numbers = #tpu.dot_dimension_numbers<[1], [0], [0], [1], [0, 0, 1, 1], [], []>, precision = #tpu.contract_precision<fp32>} : vector<4x4xf32>, vector<4x256xf32>, vector<4x256xf32> -> vector<4x256xf32>
    %15 = vector.broadcast %2 : f32 to vector<4x256xf32>
    %16 = arith.mulf %15, %14 : vector<4x256xf32>
    %17 = arith.addf %16, %1 : vector<4x256xf32>
    %c0_6 = arith.constant 0 : index
    %c0_7 = arith.constant 0 : index
    %c0_8 = arith.constant 0 : index
    %18 = vector.load %arg3[%c0_6, %c0_7, %c0_8] : memref<1x4x256xf32, #tpu.memory_space<vmem>>, vector<1x4x256xf32>
    %19 = vector.shape_cast %18 : vector<1x4x256xf32> to vector<4x256xf32>
    %20 = vector.shape_cast %17 : vector<4x256xf32> to vector<1x4x256xf32>
    tpu.vector_store %arg3[%c0_6, %c0_7, %c0_8], %20 {strides = array<i32>} : memref<1x4x256xf32, #tpu.memory_space<vmem>>, vector<1x4x256xf32>,
    return
  }
  func.func @transform_0(%arg0: i32) -> i32 {
    %c0_i32 = arith.constant 0 : i32
    %c0_i32_0 = arith.constant 0 : i32
    return %c0_i32 : i32
  }
  func.func @transform_1(%arg0: i32) -> (i32, i32, i32) {
    %c0_i32 = arith.constant 0 : i32
    %c0_i32_0 = arith.constant 0 : i32
    %c0_i32_1 = arith.constant 0 : i32
    return %arg0, %c0_i32, %c0_i32_0 : i32, i32, i32
  }
  func.func @transform_2(%arg0: i32) -> (i32, i32, i32) {
    %c0_i32 = arith.constant 0 : i32
    %c0_i32_0 = arith.constant 0 : i32
    %c0_i32_1 = arith.constant 0 : i32
    return %arg0, %c0_i32, %c0_i32_0 : i32, i32, i32
  }
}

</mosaic_0001>

<llo_original>
// kernel: channel_attention_forward.1
$region0: #{channel_attention_forward.1}
  #allocation0 [shape = 'u32[]', space=smem, size = 0x4, offset = 0x4, fixed_abs, tag = 'smem constant byte address 0x4 - core index']
  #allocation1 [shape = 'u32[144,128]{1,0:T(1,128)}', space=vmem, size = 0x12000, scoped, tag = 'internal scratch']
  #allocation2 [shape = 'f32[1]{0:T(128)S(6)}', space=smem, size = 0x200, scoped, tag = 'scoped memory for channel_attention_forward.1']
  %s0 = inlined_call_operand.<no memory space> [shape: f32[1], index: 0, kind: input, shape index: {}]
  %s1 = inlined_call_operand.vmem [shape: f32[2,4,256], index: 1, kind: input, shape index: {}]
  %s2 = inlined_call_operand.vmem [shape: f32[2,4,256], index: 2, kind: output, shape index: {}]
  %s3 = sld [smem:[#allocation0]]
  $region41: #{channel_attention_forward.1} parent=0
    _
  %s5 = ssub.s32 1, %s3
  %s6 = scalar_select 0, %s5, %s3
  %7 = sst [smem:[#allocation2]] %s0
  loop: start=0, step=1, limit=4
  $region2: #{channel_attention_forward.1} parent=0 // loop_pre_header
    _
  $region3: #{channel_attention_forward.1} parent=0 // loop_header
    %s9 = sphi 0, %s13
    %p10 = scmp.ge.s32.totalorder %s9, 4
    %s17 = sphi 0, %s17
    %s19 = sphi 0, %s17
    %s20 = sphi 0, %s19
    %s34 = sphi 0, %s20
    %s40 = sphi 0, %s42
    %s43 = sphi 0, %s40
    %s44 = sphi 0, %s43
    %s60 = sphi 0, %s44
    %s66 = sphi 0, %s68
    %s69 = sphi 0, %s66
    %s70 = sphi 0, %s69
    %s86 = sphi 0, %s70
  $region4: #{channel_attention_forward.1} parent=0 // loop_header_branch
    %12 = sbr.rel (%p10) target = $region8
  $region5: #{channel_attention_forward.1} parent=0 // loop_body
    %s14 = ssub.s32 %s9, 1
    %s15 = ssub.s32 %s9, 2
    %s16 = sadd.s32 %s9, 1
    %s18 = sadd.s32 %s17, 1
    %p21 = scmp.eq.s32.totalorder %s9, 1
    %p22 = scmp.ne.s32.totalorder %s17, %s19
    %p23 = scmp.eq.s32.totalorder %s9, 0
    %p24 = por %p22, %p23
    %p25 = scmp.ne.s32.totalorder %s17, %s19
    %p26 = scmp.eq.s32.totalorder %s14, 1
    %p27 = por %p25, %p26
    %p28 = scmp.ne.s32.totalorder %s19, %s20
    %p29 = scmp.eq.s32.totalorder %s14, 0
    %p30 = por %p28, %p29
    %p31 = scmp.ne.s32.totalorder %s19, %s20
    %p32 = scmp.eq.s32.totalorder %s15, 1
    %p33 = por %p31, %p32
    %p35 = scmp.ne.s32.totalorder %s20, %s34
    %p36 = scmp.eq.s32.totalorder %s15, 0
    %p37 = por %p35, %p36
    %s38 = ssub.s32 %s9, %s16
    %p39 = scmp.eq.s32.totalorder %s38, 0
    %s41 = sadd.s32 %s40, 1
    %s42 = scalar_select %p39, %s40, %s41
    %p45 = pneg %p39
    %p46 = scmp.eq.s32.totalorder %s9, 1
    %p47 = por %p45, %p46
    %p48 = scmp.ne.s32.totalorder %s40, %s43
    %p49 = scmp.eq.s32.totalorder %s9, 0
    %p50 = por %p48, %p49
    %p51 = scmp.ne.s32.totalorder %s40, %s43
    %p52 = scmp.eq.s32.totalorder %s14, 1
    %p53 = por %p51, %p52
    %p54 = scmp.ne.s32.totalorder %s43, %s44
    %p55 = scmp.eq.s32.totalorder %s14, 0
    %p56 = por %p54, %p55
    %p57 = scmp.ne.s32.totalorder %s43, %s44
    %p58 = scmp.eq.s32.totalorder %s15, 1
    %p59 = por %p57, %p58
    %p61 = scmp.ne.s32.totalorder %s44, %s60
    %p62 = scmp.eq.s32.totalorder %s15, 0
    %p63 = por %p61, %p62
    %s64 = ssub.s32 %s9, %s16
    %p65 = scmp.eq.s32.totalorder %s64, 0
    %s67 = sadd.s32 %s66, 1
    %s68 = scalar_select %p65, %s66, %s67
    %p71 = pneg %p65
    %p72 = scmp.eq.s32.totalorder %s9, 1
    %p73 = por %p71, %p72
    %p74 = scmp.ne.s32.totalorder %s66, %s69
    %p75 = scmp.eq.s32.totalorder %s9, 0
    %p76 = por %p74, %p75
    %p77 = scmp.ne.s32.totalorder %s66, %s69
    %p78 = scmp.eq.s32.totalorder %s14, 1
    %p79 = por %p77, %p78
    %p80 = scmp.ne.s32.totalorder %s69, %s70
    %p81 = scmp.eq.s32.totalorder %s14, 0
    %p82 = por %p80, %p81
    %p83 = scmp.ne.s32.totalorder %s69, %s70
    %p84 = scmp.eq.s32.totalorder %s15, 1
    %p85 = por %p83, %p84
    %p87 = scmp.ne.s32.totalorder %s70, %s86
    %p88 = scmp.eq.s32.totalorder %s15, 0
    %p89 = por %p87, %p88
    %p90 = scmp.le.s32.totalorder 1, %s9
    %p91 = scmp.lt.s32.totalorder %s9, 3
    %p92 = pnand %p90, %p91
    %p93 = pneg %p92
    // Predicated region
    $region9: #{channel_attention_forward.1} parent=5 // pred_check
      _
    $region10: #{channel_attention_forward.1} parent=5 // pred_check_branch
      %95 = sbr.rel (%p92) target = $region12
    $region11: #{channel_attention_forward.1} parent=5 // pred_region
      %s96 = ssub.s32 %s9, 1
      // Predicated region
      $region13: #{channel_attention_forward.1} parent=11 // pred_check
        %p97 = pneg %p30
      $region14: #{channel_attention_forward.1} parent=11 // pred_check_branch
        %99 = sbr.rel (%p97) target = $region16
      $region15: #{channel_attention_forward.1} parent=11 // pred_region
        _
      $region16: #{channel_attention_forward.1} parent=11 // pred_fallthru
        _
    $region12: #{channel_attention_forward.1} parent=5 // pred_fallthru
      _
    %p100 = scmp.lt.s32.totalorder %s9, 2
    // Predicated region
    $region17: #{channel_attention_forward.1} parent=5 // pred_check
      %p101 = pneg %p100
    $region18: #{channel_attention_forward.1} parent=5 // pred_check_branch
      %103 = sbr.rel (%p101) target = $region20
    $region19: #{channel_attention_forward.1} parent=5 // pred_region
      // Predicated region
      $region21: #{channel_attention_forward.1} parent=19 // pred_check
        %p104 = pneg %p50
      $region22: #{channel_attention_forward.1} parent=19 // pred_check_branch
        %106 = sbr.rel (%p104) target = $region24
      $region23: #{channel_attention_forward.1} parent=19 // pred_region
        %p107 = scmp.lt.s32.totalorder %s9, 1
        %s108 = scalar_select %p107, %s9, 1
        %s109 = smul.addr %s108, 2
        %s110 = smul.addr %s109, 4
        %s111 = scalar_lea.vmem %s1, %s110
      $region24: #{channel_attention_forward.1} parent=19 // pred_fallthru
        _
    $region20: #{channel_attention_forward.1} parent=5 // pred_fallthru
      _
    %p112 = scmp.le.s32.totalorder 1, %s9
    %p113 = scmp.lt.s32.totalorder %s9, 3
    %p114 = pnand %p112, %p113
    %p115 = pneg %p114
    // Predicated region
    $region25: #{channel_attention_forward.1} parent=5 // pred_check
      _
    $region26: #{channel_attention_forward.1} parent=5 // pred_check_branch
      %117 = sbr.rel (%p114) target = $region28
    $region27: #{channel_attention_forward.1} parent=5 // pred_region
      %s118 = ssub.s32 %s9, 1
      %p119 = pneg %p30
      %p120 = pneg %p27
      %p121 = scmp.lt.s32.totalorder %s14, 1
      %s122 = scalar_select %p121, %s14, 1
      %s123 = smul.addr %s122, 2
      %s124 = smul.addr %s123, 4
      %s125 = scalar_lea.vmem %s1, %s124
      %p126 = pneg %p56
      %p127 = pneg %p53
      %p128 = pneg %p82
      %p129 = pneg %p79
      %p130 = scmp.lt.s32.totalorder %s14, 1
      %s131 = scalar_select %p130, %s14, 1
      %s132 = smul.addr %s131, 2
      %s133 = smul.addr %s132, 4
      %s134 = scalar_lea.vmem %s2, %s133
      %p135 = scmp.lt.s32.totalorder %s14, 1
      %s136 = scalar_select %p135, %s14, 1
      %s137 = smul.addr %s136, 2
      %s138 = smul.addr %s137, 4
      %s139 = scalar_lea.vmem %s1, %s138
      %p140 = scmp.lt.s32.totalorder %s14, 1
      %s141 = scalar_select %p140, %s14, 1
      %s142 = smul.addr %s141, 2
      %s143 = smul.addr %s142, 4
      %s144 = scalar_lea.vmem %s2, %s143
      %v145 = vld [vmem:[%s139] sm:$0xff]
      %s146 = sld [smem:[#allocation2]]
      %v148 = vcombine.high %v145, %v145
      %v150 = vand.u32 %v148, 4294901760
      %151 = vmatprep.subr.mxu0 %v150
      %v152 = vand.u32 %v145, 4294901760
      %153 = vmatpush1.xpose.msra.mxu0 %v152
      %154 = vmatprep.subr.mxu0 0.0
      %155 = vmatpush1.xpose.msra.mxu0 0.0
      %156 = vmatprep.subr.mxu0 0.0
      %157 = vmatpush1.xpose.msra.mxu0 0.0
      %158 = vmatprep.subr.mxu0 0.0
      %159 = vmatpush1.xpose.msra.mxu0 0.0
      %160 = vmatprep.subr.mxu0 0.0
      %161 = vmatpush1.xpose.msra.mxu0 0.0
      %162 = vmatprep.subr.mxu0 0.0
      %163 = vmatpush1.xpose.msra.mxu0 0.0
      %164 = vmatprep.subr.mxu0 0.0
      %165 = vmatpush1.xpose.msra.mxu0 0.0
      %166 = vmatprep.subr.mxu0 0.0
      %167 = vmatpush1.xpose.msra.mxu0 0.0
      %168 = vmatprep.subr.mxu0 0.0
      %169 = vmatpush1.xpose.msra.mxu0 0.0
      %170 = vmatprep.subr.mxu0 0.0
      %171 = vmatpush1.xpose.msra.mxu0 0.0
      %172 = vmatprep.subr.mxu0 0.0
      %173 = vmatpush1.xpose.msra.mxu0 0.0
      %174 = vmatprep.subr.mxu0 0.0
      %175 = vmatpush1.xpose.msra.mxu0 0.0
      %176 = vmatprep.subr.mxu0 0.0
      %177 = vmatpush1.xpose.msra.mxu0 0.0
      %178 = vmatprep.subr.mxu0 0.0
      %179 = vmatpush1.xpose.msra.mxu0 0.0
      %180 = vmatprep.subr.mxu0 0.0
      %181 = vmatpush1.xpose.msra.mxu0 0.0
      %182 = vmatprep.subr.mxu0 0.0
      %183 = vmatpush1.xpose.msra.mxu0 0.0
      %184 = vmatprep.subr.mxu0 0.0
      %185 = vmatpush1.xpose.msra.mxu0 0.0
      %186 = vmatprep.subr.mxu0 0.0
      %187 = vmatpush1.xpose.msra.mxu0 0.0
      %188 = vmatprep.subr.mxu0 0.0
      %189 = vmatpush1.xpose.msra.mxu0 0.0
      %190 = vmatprep.subr.mxu0 0.0
      %191 = vmatpush1.xpose.msra.mxu0 0.0
      %192 = vmatprep.subr.mxu0 0.0
      %193 = vmatpush1.xpose.msra.mxu0 0.0
      %194 = vmatprep.subr.mxu0 0.0
      %195 = vmatpush1.xpose.msra.mxu0 0.0
      %196 = vmatprep.subr.mxu0 0.0
      %197 = vmatpush1.xpose.msra.mxu0 0.0
      %198 = vmatprep.subr.mxu0 0.0
      %199 = vmatpush1.xpose.msra.mxu0 0.0
      %200 = vmatprep.subr.mxu0 0.0
      %201 = vmatpush1.xpose.msra.mxu0 0.0
      %202 = vmatprep.subr.mxu0 0.0
      %203 = vmatpush1.xpose.msra.mxu0 0.0
      %204 = vmatprep.subr.mxu0 0.0
      %205 = vmatpush1.xpose.msra.mxu0 0.0
      %206 = vmatprep.subr.mxu0 0.0
      %207 = vmatpush1.xpose.msra.mxu0 0.0
      %208 = vmatprep.subr.mxu0 0.0
      %209 = vmatpush1.xpose.msra.mxu0 0.0
      %210 = vmatprep.subr.mxu0 0.0
      %211 = vmatpush1.xpose.msra.mxu0 0.0
      %212 = vmatprep.subr.mxu0 0.0
      %213 = vmatpush1.xpose.msra.mxu0 0.0
      %214 = vmatprep.subr.mxu0 0.0
      %215 = vmatpush1.xpose.msra.mxu0 0.0
      %v216 = vand.u32 %v148, 4294901760
      %v217 = vsub.f32 %v148, %v216
      %v218 = vand.u32 %v217, 4294901760
      %v219 = vsub.f32 %v217, %v218
      %v220 = vand.u32 %v219, 4294901760
      %221 = vmatprep.mubr.f32.mxu0 %v220
      %v222 = vand.u32 %v145, 4294901760
      %v223 = vsub.f32 %v145, %v222
      %v224 = vand.u32 %v223, 4294901760
      %v225 = vsub.f32 %v223, %v224
      %v226 = vand.u32 %v225, 4294901760
      %227 = vmatmul.mubr.f32.gmra.mrb[0].mxu0 %v226
      %v228 = vpop.f32.mrb[0].mxu0
      %v229 = vadd.f32 0.0, %v228
      %v230 = vpop.f32.mrb[0].mxu0
      %231 = vdwg.mxu0
      %v232 = vand.u32 %v148, 4294901760
      %v233 = vsub.f32 %v148, %v232
      %v234 = vand.u32 %v233, 4294901760
      %v235 = vsub.f32 %v233, %v234
      %v236 = vand.u32 %v235, 4294901760
      %237 = vmatprep.subr.mxu0 %v236
      %v238 = vand.u32 %v145, 4294901760
      %v239 = vsub.f32 %v145, %v238
      %v240 = vand.u32 %v239, 4294901760
      %v241 = vsub.f32 %v239, %v240
      %v242 = vand.u32 %v241, 4294901760
      %243 = vmatpush1.xpose.msra.mxu0 %v242
      %244 = vmatprep.subr.mxu0 0.0
      %245 = vmatpush1.xpose.msra.mxu0 0.0
      %246 = vmatprep.subr.mxu0 0.0
      %247 = vmatpush1.xpose.msra.mxu0 0.0
      %248 = vmatprep.subr.mxu0 0.0
      %249 = vmatpush1.xpose.msra.mxu0 0.0
      %250 = vmatprep.subr.mxu0 0.0
      %251 = vmatpush1.xpose.msra.mxu0 0.0
      %252 = vmatprep.subr.mxu0 0.0
      %253 = vmatpush1.xpose.msra.mxu0 0.0
      %254 = vmatprep.subr.mxu0 0.0
      %255 = vmatpush1.xpose.msra.mxu0 0.0
      %256 = vmatprep.subr.mxu0 0.0
      %257 = vmatpush1.xpose.msra.mxu0 0.0
      %258 = vmatprep.subr.mxu0 0.0
      %259 = vmatpush1.xpose.msra.mxu0 0.0
      %260 = vmatprep.subr.mxu0 0.0
      %261 = vmatpush1.xpose.msra.mxu0 0.0
      %262 = vmatprep.subr.mxu0 0.0
      %263 = vmatpush1.xpose.msra.mxu0 0.0
      %264 = vmatprep.subr.mxu0 0.0
      %265 = vmatpush1.xpose.msra.mxu0 0.0
      %266 = vmatprep.subr.mxu0 0.0
      %267 = vmatpush1.xpose.msra.mxu0 0.0
      %268 = vmatprep.subr.mxu0 0.0
      %269 = vmatpush1.xpose.msra.mxu0 0.0
      %270 = vmatprep.subr.mxu0 0.0
      %271 = vmatpush1.xpose.msra.mxu0 0.0
      %272 = vmatprep.subr.mxu0 0.0
      %273 = vmatpush1.xpose.msra.mxu0 0.0
      %274 = vmatprep.subr.mxu0 0.0
      %275 = vmatpush1.xpose.msra.mxu0 0.0
      %276 = vmatprep.subr.mxu0 0.0
      %277 = vmatpush1.xpose.msra.mxu0 0.0
      %278 = vmatprep.subr.mxu0 0.0
      %279 = vmatpush1.xpose.msra.mxu0 0.0
      %280 = vmatprep.subr.mxu0 0.0
      %281 = vmatpush1.xpose.msra.mxu0 0.0
      %282 = vmatprep.subr.mxu0 0.0
      %283 = vmatpush1.xpose.msra.mxu0 0.0
      %284 = vmatprep.subr.mxu0 0.0
      %285 = vmatpush1.xpose.msra.mxu0 0.0
      %286 = vmatprep.subr.mxu0 0.0
      %287 = vmatpush1.xpose.msra.mxu0 0.0
      %288 = vmatprep.subr.mxu0 0.0
      %289 = vmatpush1.xpose.msra.mxu0 0.0
      %290 = vmatprep.subr.mxu0 0.0
      %291 = vmatpush1.xpose.msra.mxu0 0.0
      %292 = vmatprep.subr.mxu0 0.0
      %293 = vmatpush1.xpose.msra.mxu0 0.0
      %294 = vmatprep.subr.mxu0 0.0
      %295 = vmatpush1.xpose.msra.mxu0 0.0
      %296 = vmatprep.subr.mxu0 0.0
      %297 = vmatpush1.xpose.msra.mxu0 0.0
      %298 = vmatprep.subr.mxu0 0.0
      %299 = vmatpush1.xpose.msra.mxu0 0.0
      %300 = vmatprep.subr.mxu0 0.0
      %301 = vmatpush1.xpose.msra.mxu0 0.0
      %302 = vmatprep.subr.mxu0 0.0
      %303 = vmatpush1.xpose.msra.mxu0 0.0
      %304 = vmatprep.subr.mxu0 0.0
      %305 = vmatpush1.xpose.msra.mxu0 0.0
      %v306 = vand.u32 %v148, 4294901760
      %307 = vmatprep.mubr.f32.mxu0 %v306
      %v308 = vand.u32 %v145, 4294901760
      %309 = vmatmul.mubr.f32.gmra.mrb[0].mxu0 %v308
      %v310 = vpop.f32.mrb[0].mxu0
      %v311 = vadd.f32 %v229, %v310
      %v312 = vpop.f32.mrb[0].mxu0
      %313 = vdwg.mxu0
      %v314 = vand.u32 %v148, 4294901760
      %v315 = vsub.f32 %v148, %v314
      %316 = vmatprep.subr.mxu0 %v315
      %v317 = vand.u32 %v145, 4294901760
      %v318 = vsub.f32 %v145, %v317
      %319 = vmatpush1.xpose.msra.mxu0 %v318
      %320 = vmatprep.subr.mxu0 0.0
      %321 = vmatpush1.xpose.msra.mxu0 0.0
      %322 = vmatprep.subr.mxu0 0.0
      %323 = vmatpush1.xpose.msra.mxu0 0.0
      %324 = vmatprep.subr.mxu0 0.0
      %325 = vmatpush1.xpose.msra.mxu0 0.0
      %326 = vmatprep.subr.mxu0 0.0
      %327 = vmatpush1.xpose.msra.mxu0 0.0
      %328 = vmatprep.subr.mxu0 0.0
      %329 = vmatpush1.xpose.msra.mxu0 0.0
      %330 = vmatprep.subr.mxu0 0.0
      %331 = vmatpush1.xpose.msra.mxu0 0.0
      %332 = vmatprep.subr.mxu0 0.0
      %333 = vmatpush1.xpose.msra.mxu0 0.0
      %334 = vmatprep.subr.mxu0 0.0
      %335 = vmatpush1.xpose.msra.mxu0 0.0
      %336 = vmatprep.subr.mxu0 0.0
      %337 = vmatpush1.xpose.msra.mxu0 0.0
      %338 = vmatprep.subr.mxu0 0.0
      %339 = vmatpush1.xpose.msra.mxu0 0.0
      %340 = vmatprep.subr.mxu0 0.0
      %341 = vmatpush1.xpose.msra.mxu0 0.0
      %342 = vmatprep.subr.mxu0 0.0
      %343 = vmatpush1.xpose.msra.mxu0 0.0
      %344 = vmatprep.subr.mxu0 0.0
      %345 = vmatpush1.xpose.msra.mxu0 0.0
      %346 = vmatprep.subr.mxu0 0.0
      %347 = vmatpush1.xpose.msra.mxu0 0.0
      %348 = vmatprep.subr.mxu0 0.0
      %349 = vmatpush1.xpose.msra.mxu0 0.0
      %350 = vmatprep.subr.mxu0 0.0
      %351 = vmatpush1.xpose.msra.mxu0 0.0
      %352 = vmatprep.subr.mxu0 0.0
      %353 = vmatpush1.xpose.msra.mxu0 0.0
      %354 = vmatprep.subr.mxu0 0.0
      %355 = vmatpush1.xpose.msra.mxu0 0.0
      %356 = vmatprep.subr.mxu0 0.0
      %357 = vmatpush1.xpose.msra.mxu0 0.0
      %358 = vmatprep.subr.mxu0 0.0
      %359 = vmatpush1.xpose.msra.mxu0 0.0
      %360 = vmatprep.subr.mxu0 0.0
      %361 = vmatpush1.xpose.msra.mxu0 0.0
      %362 = vmatprep.subr.mxu0 0.0
      %363 = vmatpush1.xpose.msra.mxu0 0.0
      %364 = vmatprep.subr.mxu0 0.0
      %365 = vmatpush1.xpose.msra.mxu0 0.0
      %366 = vmatprep.subr.mxu0 0.0
      %367 = vmatpush1.xpose.msra.mxu0 0.0
      %368 = vmatprep.subr.mxu0 0.0
      %369 = vmatpush1.xpose.msra.mxu0 0.0
      %370 = vmatprep.subr.mxu0 0.0
      %371 = vmatpush1.xpose.msra.mxu0 0.0
      %372 = vmatprep.subr.mxu0 0.0
      %373 = vmatpush1.xpose.msra.mxu0 0.0
      %374 = vmatprep.subr.mxu0 0.0
      %375 = vmatpush1.xpose.msra.mxu0 0.0
      %376 = vmatprep.subr.mxu0 0.0
      %377 = vmatpush1.xpose.msra.mxu0 0.0
      %378 = vmatprep.subr.mxu0 0.0
      %379 = vmatpush1.xpose.msra.mxu0 0.0
      %380 = vmatprep.subr.mxu0 0.0
      %381 = vmatpush1.xpose.msra.mxu0 0.0
      %v382 = vand.u32 %v148, 4294901760
      %v383 = vsub.f32 %v148, %v382
      %384 = vmatprep.mubr.f32.mxu0 %v383
      %v385 = vand.u32 %v145, 4294901760
      %v386 = vsub.f32 %v145, %v385
      %387 = vmatmul.mubr.f32.gmra.mrb[0].mxu0 %v386
      %v388 = vpop.f32.mrb[0].mxu0
      %v389 = vadd.f32 %v311, %v388
      %v390 = vpop.f32.mrb[0].mxu0
      %391 = vdwg.mxu0
      %v392 = vand.u32 %v148, 4294901760
      %393 = vmatprep.subr.mxu0 %v392
      %v394 = vand.u32 %v145, 4294901760
      %395 = vmatpush1.xpose.msra.mxu0 %v394
      %396 = vmatprep.subr.mxu0 0.0
      %397 = vmatpush1.xpose.msra.mxu0 0.0
      %398 = vmatprep.subr.mxu0 0.0
      %399 = vmatpush1.xpose.msra.mxu0 0.0
      %400 = vmatprep.subr.mxu0 0.0
      %401 = vmatpush1.xpose.msra.mxu0 0.0
      %402 = vmatprep.subr.mxu0 0.0
      %403 = vmatpush1.xpose.msra.mxu0 0.0
      %404 = vmatprep.subr.mxu0 0.0
      %405 = vmatpush1.xpose.msra.mxu0 0.0
      %406 = vmatprep.subr.mxu0 0.0
      %407 = vmatpush1.xpose.msra.mxu0 0.0
      %408 = vmatprep.subr.mxu0 0.0
      %409 = vmatpush1.xpose.msra.mxu0 0.0
      %410 = vmatprep.subr.mxu0 0.0
      %411 = vmatpush1.xpose.msra.mxu0 0.0
      %412 = vmatprep.subr.mxu0 0.0
      %413 = vmatpush1.xpose.msra.mxu0 0.0
      %414 = vmatprep.subr.mxu0 0.0
      %415 = vmatpush1.xpose.msra.mxu0 0.0
      %416 = vmatprep.subr.mxu0 0.0
      %417 = vmatpush1.xpose.msra.mxu0 0.0
      %418 = vmatprep.subr.mxu0 0.0
      %419 = vmatpush1.xpose.msra.mxu0 0.0
      %420 = vmatprep.subr.mxu0 0.0
      %421 = vmatpush1.xpose.msra.mxu0 0.0
      %422 = vmatprep.subr.mxu0 0.0
      %423 = vmatpush1.xpose.msra.mxu0 0.0
      %424 = vmatprep.subr.mxu0 0.0
      %425 = vmatpush1.xpose.msra.mxu0 0.0
      %426 = vmatprep.subr.mxu0 0.0
      %427 = vmatpush1.xpose.msra.mxu0 0.0
      %428 = vmatprep.subr.mxu0 0.0
      %429 = vmatpush1.xpose.msra.mxu0 0.0
      %430 = vmatprep.subr.mxu0 0.0
      %431 = vmatpush1.xpose.msra.mxu0 0.0
      %432 = vmatprep.subr.mxu0 0.0
      %433 = vmatpush1.xpose.msra.mxu0 0.0
      %434 = vmatprep.subr.mxu0 0.0
      %435 = vmatpush1.xpose.msra.mxu0 0.0
      %436 = vmatprep.subr.mxu0 0.0
      %437 = vmatpush1.xpose.msra.mxu0 0.0
      %438 = vmatprep.subr.mxu0 0.0
      %439 = vmatpush1.xpose.msra.mxu0 0.0
      %440 = vmatprep.subr.mxu0 0.0
      %441 = vmatpush1.xpose.msra.mxu0 0.0
      %442 = vmatprep.subr.mxu0 0.0
      %443 = vmatpush1.xpose.msra.mxu0 0.0
      %444 = vmatprep.subr.mxu0 0.0
      %445 = vmatpush1.xpose.msra.mxu0 0.0
      %446 = vmatprep.subr.mxu0 0.0
      %447 = vmatpush1.xpose.msra.mxu0 0.0
      %448 = vmatprep.subr.mxu0 0.0
      %449 = vmatpush1.xpose.msra.mxu0 0.0
      %450 = vmatprep.subr.mxu0 0.0
      %451 = vmatpush1.xpose.msra.mxu0 0.0
      %452 = vmatprep.subr.mxu0 0.0
      %453 = vmatpush1.xpose.msra.mxu0 0.0
      %454 = vmatprep.subr.mxu0 0.0
      %455 = vmatpush1.xpose.msra.mxu0 0.0
      %456 = vmatprep.subr.mxu0 0.0
      %457 = vmatpush1.xpose.msra.mxu0 0.0
      %v458 = vand.u32 %v148, 4294901760
      %v459 = vsub.f32 %v148, %v458
      %v460 = vand.u32 %v459, 4294901760
      %461 = vmatprep.mubr.f32.mxu0 %v460
      %v462 = vand.u32 %v145, 4294901760
      %v463 = vsub.f32 %v145, %v462
      %v464 = vand.u32 %v463, 4294901760
      %465 = vmatmul.mubr.f32.gmra.mrb[0].mxu0 %v464
      %v466 = vpop.f32.mrb[0].mxu0
      %v467 = vadd.f32 %v389, %v466
      %v468 = vpop.f32.mrb[0].mxu0
      %469 = vdwg.mxu0
      %v470 = vand.u32 %v148, 4294901760
      %v471 = vsub.f32 %v148, %v470
      %v472 = vand.u32 %v471, 4294901760
      %473 = vmatprep.subr.mxu0 %v472
      %v474 = vand.u32 %v145, 4294901760
      %v475 = vsub.f32 %v145, %v474
      %v476 = vand.u32 %v475, 4294901760
      %477 = vmatpush1.xpose.msra.mxu0 %v476
      %478 = vmatprep.subr.mxu0 0.0
      %479 = vmatpush1.xpose.msra.mxu0 0.0
      %480 = vmatprep.subr.mxu0 0.0
      %481 = vmatpush1.xpose.msra.mxu0 0.0
      %482 = vmatprep.subr.mxu0 0.0
      %483 = vmatpush1.xpose.msra.mxu0 0.0
      %484 = vmatprep.subr.mxu0 0.0
      %485 = vmatpush1.xpose.msra.mxu0 0.0
      %486 = vmatprep.subr.mxu0 0.0
      %487 = vmatpush1.xpose.msra.mxu0 0.0
      %488 = vmatprep.subr.mxu0 0.0
      %489 = vmatpush1.xpose.msra.mxu0 0.0
      %490 = vmatprep.subr.mxu0 0.0
      %491 = vmatpush1.xpose.msra.mxu0 0.0
      %492 = vmatprep.subr.mxu0 0.0
      %493 = vmatpush1.xpose.msra.mxu0 0.0
      %494 = vmatprep.subr.mxu0 0.0
      %495 = vmatpush1.xpose.msra.mxu0 0.0
      %496 = vmatprep.subr.mxu0 0.0
      %497 = vmatpush1.xpose.msra.mxu0 0.0
      %498 = vmatprep.subr.mxu0 0.0
      %499 = vmatpush1.xpose.msra.mxu0 0.0
      %500 = vmatprep.subr.mxu0 0.0
      %501 = vmatpush1.xpose.msra.mxu0 0.0
      %502 = vmatprep.subr.mxu0 0.0
      %503 = vmatpush1.xpose.msra.mxu0 0.0
      %504 = vmatprep.subr.mxu0 0.0
      %505 = vmatpush1.xpose.msra.mxu0 0.0
      %506 = vmatprep.subr.mxu0 0.0
      %507 = vmatpush1.xpose.msra.mxu0 0.0
      %508 = vmatprep.subr.mxu0 0.0
      %509 = vmatpush1.xpose.msra.mxu0 0.0
      %510 = vmatprep.subr.mxu0 0.0
      %511 = vmatpush1.xpose.msra.mxu0 0.0
      %512 = vmatprep.subr.mxu0 0.0
      %513 = vmatpush1.xpose.msra.mxu0 0.0
      %514 = vmatprep.subr.mxu0 0.0
      %515 = vmatpush1.xpose.msra.mxu0 0.0
      %516 = vmatprep.subr.mxu0 0.0
      %517 = vmatpush1.xpose.msra.mxu0 0.0
      %518 = vmatprep.subr.mxu0 0.0
      %519 = vmatpush1.xpose.msra.mxu0 0.0
      %520 = vmatprep.subr.mxu0 0.0
      %521 = vmatpush1.xpose.msra.mxu0 0.0
      %522 = vmatprep.subr.mxu0 0.0
      %523 = vmatpush1.xpose.msra.mxu0 0.0
      %524 = vmatprep.subr.mxu0 0.0
      %525 = vmatpush1.xpose.msra.mxu0 0.0
      %526 = vmatprep.subr.mxu0 0.0
      %527 = vmatpush1.xpose.msra.mxu0 0.0
      %528 = vmatprep.subr.mxu0 0.0
      %529 = vmatpush1.xpose.msra.mxu0 0.0
      %530 = vmatprep.subr.mxu0 0.0
      %531 = vmatpush1.xpose.msra.mxu0 0.0
      %532 = vmatprep.subr.mxu0 0.0
      %533 = vmatpush1.xpose.msra.mxu0 0.0
      %534 = vmatprep.subr.mxu0 0.0
      %535 = vmatpush1.xpose.msra.mxu0 0.0
      %536 = vmatprep.subr.mxu0 0.0
      %537 = vmatpush1.xpose.msra.mxu0 0.0
      %538 = vmatprep.subr.mxu0 0.0
      %539 = vmatpush1.xpose.msra.mxu0 0.0
      %v540 = vand.u32 %v148, 4294901760
      %541 = vmatprep.mubr.f32.mxu0 %v540
      %v542 = vand.u32 %v145, 4294901760
      %543 = vmatmul.mubr.f32.gmra.mrb[0].mxu0 %v542
      %v544 = vpop.f32.mrb[0].mxu0
      %v545 = vadd.f32 %v467, %v544
      %v546 = vpop.f32.mrb[0].mxu0
      %547 = vdwg.mxu0
      %v548 = vand.u32 %v148, 4294901760
      %549 = vmatprep.subr.mxu0 %v548
      %v550 = vand.u32 %v145, 4294901760
      %551 = vmatpush1.xpose.msra.mxu0 %v550
      %552 = vmatprep.subr.mxu0 0.0
      %553 = vmatpush1.xpose.msra.mxu0 0.0
      %554 = vmatprep.subr.mxu0 0.0
      %555 = vmatpush1.xpose.msra.mxu0 0.0
      %556 = vmatprep.subr.mxu0 0.0
      %557 = vmatpush1.xpose.msra.mxu0 0.0
      %558 = vmatprep.subr.mxu0 0.0
      %559 = vmatpush1.xpose.msra.mxu0 0.0
      %560 = vmatprep.subr.mxu0 0.0
      %561 = vmatpush1.xpose.msra.mxu0 0.0
      %562 = vmatprep.subr.mxu0 0.0
      %563 = vmatpush1.xpose.msra.mxu0 0.0
      %564 = vmatprep.subr.mxu0 0.0
      %565 = vmatpush1.xpose.msra.mxu0 0.0
      %566 = vmatprep.subr.mxu0 0.0
      %567 = vmatpush1.xpose.msra.mxu0 0.0
      %568 = vmatprep.subr.mxu0 0.0
      %569 = vmatpush1.xpose.msra.mxu0 0.0
      %570 = vmatprep.subr.mxu0 0.0
      %571 = vmatpush1.xpose.msra.mxu0 0.0
      %572 = vmatprep.subr.mxu0 0.0
      %573 = vmatpush1.xpose.msra.mxu0 0.0
      %574 = vmatprep.subr.mxu0 0.0
      %575 = vmatpush1.xpose.msra.mxu0 0.0
      %576 = vmatprep.subr.mxu0 0.0
      %577 = vmatpush1.xpose.msra.mxu0 0.0
      %578 = vmatprep.subr.mxu0 0.0
      %579 = vmatpush1.xpose.msra.mxu0 0.0
      %580 = vmatprep.subr.mxu0 0.0
      %581 = vmatpush1.xpose.msra.mxu0 0.0
      %582 = vmatprep.subr.mxu0 0.0
      %583 = vmatpush1.xpose.msra.mxu0 0.0
      %584 = vmatprep.subr.mxu0 0.0
      %585 = vmatpush1.xpose.msra.mxu0 0.0
      %586 = vmatprep.subr.mxu0 0.0
      %587 = vmatpush1.xpose.msra.mxu0 0.0
      %588 = vmatprep.subr.mxu0 0.0
      %589 = vmatpush1.xpose.msra.mxu0 0.0
      %590 = vmatprep.subr.mxu0 0.0
      %591 = vmatpush1.xpose.msra.mxu0 0.0
      %592 = vmatprep.subr.mxu0 0.0
      %593 = vmatpush1.xpose.msra.mxu0 0.0
      %594 = vmatprep.subr.mxu0 0.0
      %595 = vmatpush1.xpose.msra.mxu0 0.0
      %596 = vmatprep.subr.mxu0 0.0
      %597 = vmatpush1.xpose.msra.mxu0 0.0
      %598 = vmatprep.subr.mxu0 0.0
      %599 = vmatpush1.xpose.msra.mxu0 0.0
      %600 = vmatprep.subr.mxu0 0.0
      %601 = vmatpush1.xpose.msra.mxu0 0.0
      %602 = vmatprep.subr.mxu0 0.0
      %603 = vmatpush1.xpose.msra.mxu0 0.0
      %604 = vmatprep.subr.mxu0 0.0
      %605 = vmatpush1.xpose.msra.mxu0 0.0
      %606 = vmatprep.subr.mxu0 0.0
      %607 = vmatpush1.xpose.msra.mxu0 0.0
      %608 = vmatprep.subr.mxu0 0.0
      %609 = vmatpush1.xpose.msra.mxu0 0.0
      %610 = vmatprep.subr.mxu0 0.0
      %611 = vmatpush1.xpose.msra.mxu0 0.0
      %612 = vmatprep.subr.mxu0 0.0
      %613 = vmatpush1.xpose.msra.mxu0 0.0
      %v614 = vand.u32 %v148, 4294901760
      %615 = vmatprep.mubr.f32.mxu0 %v614
      %v616 = vand.u32 %v145, 4294901760
      %617 = vmatmul.mubr.f32.gmra.mrb[0].mxu0 %v616
      %v618 = vpop.f32.mrb[0].mxu0
      %v619 = vadd.f32 %v545, %v618
      %v620 = vpop.f32.mrb[0].mxu0
      %621 = vdwg.mxu0
      %vm622 = vcmask 27648
      %v623 = vsel %vm622, %v619, inf
      %624 = vmin.xlane.f32.xlu0 %v623
      %v625 = vpop.xlane.xlu0 %624
      %v626 = vsub.f32 %v625, %v619
      %v627 = vmul.f32 %v626, 1.442695
      %v628 = vpow.pop %v627
      %v629 = vsel %vm622, %v628, 0.0
      %630 = vadd.xlane.f32.xlu0 %v629
      %v631 = vpop.xlane.xlu0 %630
      %v632 = vrcp.pop %v631
      %v633 = vmul.f32 %v628, %v632
      %vm634 = vcmask 31744
      %v636 = vsel %vm634, %v633, 0
      %vm638 = vcmask 1043456
      %v639 = vsel %vm638, %v145, 0
      %v641 = vsel %vm638, %v148, 0
      %v643 = vand.u32 %v641, 4294901760
      %644 = vmatprep.subr.mxu0 %v643
      %v645 = vand.u32 %v639, 4294901760
      %646 = vmatpush1.msra.mxu0 %v645
      %647 = vmatprep.subr.mxu0 0.0
      %648 = vmatpush1.msra.mxu0 0.0
      %649 = vmatprep.subr.mxu0 0.0
      %650 = vmatpush1.msra.mxu0 0.0
      %651 = vmatprep.subr.mxu0 0.0
      %652 = vmatpush1.msra.mxu0 0.0
      %653 = vmatprep.subr.mxu0 0.0
      %654 = vmatpush1.msra.mxu0 0.0
      %655 = vmatprep.subr.mxu0 0.0
      %656 = vmatpush1.msra.mxu0 0.0
      %657 = vmatprep.subr.mxu0 0.0
      %658 = vmatpush1.msra.mxu0 0.0
      %659 = vmatprep.subr.mxu0 0.0
      %660 = vmatpush1.msra.mxu0 0.0
      %661 = vmatprep.subr.mxu0 0.0
      %662 = vmatpush1.msra.mxu0 0.0
      %663 = vmatprep.subr.mxu0 0.0
      %664 = vmatpush1.msra.mxu0 0.0
      %665 = vmatprep.subr.mxu0 0.0
      %666 = vmatpush1.msra.mxu0 0.0
      %667 = vmatprep.subr.mxu0 0.0
      %668 = vmatpush1.msra.mxu0 0.0
      %669 = vmatprep.subr.mxu0 0.0
      %670 = vmatpush1.msra.mxu0 0.0
      %671 = vmatprep.subr.mxu0 0.0
      %672 = vmatpush1.msra.mxu0 0.0
      %673 = vmatprep.subr.mxu0 0.0
      %674 = vmatpush1.msra.mxu0 0.0
      %675 = vmatprep.subr.mxu0 0.0
      %676 = vmatpush1.msra.mxu0 0.0
      %677 = vmatprep.subr.mxu0 0.0
      %678 = vmatpush1.msra.mxu0 0.0
      %679 = vmatprep.subr.mxu0 0.0
      %680 = vmatpush1.msra.mxu0 0.0
      %681 = vmatprep.subr.mxu0 0.0
      %682 = vmatpush1.msra.mxu0 0.0
      %683 = vmatprep.subr.mxu0 0.0
      %684 = vmatpush1.msra.mxu0 0.0
      %685 = vmatprep.subr.mxu0 0.0
      %686 = vmatpush1.msra.mxu0 0.0
      %687 = vmatprep.subr.mxu0 0.0
      %688 = vmatpush1.msra.mxu0 0.0
      %689 = vmatprep.subr.mxu0 0.0
      %690 = vmatpush1.msra.mxu0 0.0
      %691 = vmatprep.subr.mxu0 0.0
      %692 = vmatpush1.msra.mxu0 0.0
      %693 = vmatprep.subr.mxu0 0.0
      %694 = vmatpush1.msra.mxu0 0.0
      %695 = vmatprep.subr.mxu0 0.0
      %696 = vmatpush1.msra.mxu0 0.0
      %697 = vmatprep.subr.mxu0 0.0
      %698 = vmatpush1.msra.mxu0 0.0
      %699 = vmatprep.subr.mxu0 0.0
      %700 = vmatpush1.msra.mxu0 0.0
      %701 = vmatprep.subr.mxu0 0.0
      %702 = vmatpush1.msra.mxu0 0.0
      %703 = vmatprep.subr.mxu0 0.0
      %704 = vmatpush1.msra.mxu0 0.0
      %705 = vmatprep.subr.mxu0 0.0
      %706 = vmatpush1.msra.mxu0 0.0
      %707 = vmatprep.subr.mxu0 0.0
      %708 = vmatpush1.msra.mxu0 0.0
      %709 = vmatprep.mubr.f32.mxu0 0.0
      %v710 = vand.u32 %v636, 4294901760
      %v711 = vsub.f32 %v636, %v710
      %v712 = vand.u32 %v711, 4294901760
      %v713 = vsub.f32 %v711, %v712
      %v714 = vand.u32 %v713, 4294901760
      %715 = vmatmul.mubr.f32.gmra.mrb[0].mxu0 %v714
      %v716 = vpop.f32.mrb[0].mxu0
      %v717 = vadd.f32 0.0, %v716
      %v718 = vpop.f32.mrb[0].mxu0
      %v719 = vadd.f32 0.0, %v718
      %720 = vdwg.mxu0
      %v721 = vand.u32 %v641, 4294901760
      %v722 = vsub.f32 %v641, %v721
      %v723 = vand.u32 %v722, 4294901760
      %v724 = vsub.f32 %v722, %v723
      %v725 = vand.u32 %v724, 4294901760
      %726 = vmatprep.subr.mxu0 %v725
      %v727 = vand.u32 %v639, 4294901760
      %v728 = vsub.f32 %v639, %v727
      %v729 = vand.u32 %v728, 4294901760
      %v730 = vsub.f32 %v728, %v729
      %v731 = vand.u32 %v730, 4294901760
      %732 = vmatpush1.msra.mxu0 %v731
      %733 = vmatprep.subr.mxu0 0.0
      %734 = vmatpush1.msra.mxu0 0.0
      %735 = vmatprep.subr.mxu0 0.0
      %736 = vmatpush1.msra.mxu0 0.0
      %737 = vmatprep.subr.mxu0 0.0
      %738 = vmatpush1.msra.mxu0 0.0
      %739 = vmatprep.subr.mxu0 0.0
      %740 = vmatpush1.msra.mxu0 0.0
      %741 = vmatprep.subr.mxu0 0.0
      %742 = vmatpush1.msra.mxu0 0.0
      %743 = vmatprep.subr.mxu0 0.0
      %744 = vmatpush1.msra.mxu0 0.0
      %745 = vmatprep.subr.mxu0 0.0
      %746 = vmatpush1.msra.mxu0 0.0
      %747 = vmatprep.subr.mxu0 0.0
      %748 = vmatpush1.msra.mxu0 0.0
      %749 = vmatprep.subr.mxu0 0.0
      %750 = vmatpush1.msra.mxu0 0.0
      %751 = vmatprep.subr.mxu0 0.0
      %752 = vmatpush1.msra.mxu0 0.0
      %753 = vmatprep.subr.mxu0 0.0
      %754 = vmatpush1.msra.mxu0 0.0
      %755 = vmatprep.subr.mxu0 0.0
      %756 = vmatpush1.msra.mxu0 0.0
      %757 = vmatprep.subr.mxu0 0.0
      %758 = vmatpush1.msra.mxu0 0.0
      %759 = vmatprep.subr.mxu0 0.0
      %760 = vmatpush1.msra.mxu0 0.0
      %761 = vmatprep.subr.mxu0 0.0
      %762 = vmatpush1.msra.mxu0 0.0
      %763 = vmatprep.subr.mxu0 0.0
      %764 = vmatpush1.msra.mxu0 0.0
      %765 = vmatprep.subr.mxu0 0.0
      %766 = vmatpush1.msra.mxu0 0.0
      %767 = vmatprep.subr.mxu0 0.0
      %768 = vmatpush1.msra.mxu0 0.0
      %769 = vmatprep.subr.mxu0 0.0
      %770 = vmatpush1.msra.mxu0 0.0
      %771 = vmatprep.subr.mxu0 0.0
      %772 = vmatpush1.msra.mxu0 0.0
      %773 = vmatprep.subr.mxu0 0.0
      %774 = vmatpush1.msra.mxu0 0.0
      %775 = vmatprep.subr.mxu0 0.0
      %776 = vmatpush1.msra.mxu0 0.0
      %777 = vmatprep.subr.mxu0 0.0
      %778 = vmatpush1.msra.mxu0 0.0
      %779 = vmatprep.subr.mxu0 0.0
      %780 = vmatpush1.msra.mxu0 0.0
      %781 = vmatprep.subr.mxu0 0.0
      %782 = vmatpush1.msra.mxu0 0.0
      %783 = vmatprep.subr.mxu0 0.0
      %784 = vmatpush1.msra.mxu0 0.0
      %785 = vmatprep.subr.mxu0 0.0
      %786 = vmatpush1.msra.mxu0 0.0
      %787 = vmatprep.subr.mxu0 0.0
      %788 = vmatpush1.msra.mxu0 0.0
      %789 = vmatprep.subr.mxu0 0.0
      %790 = vmatpush1.msra.mxu0 0.0
      %791 = vmatprep.subr.mxu0 0.0
      %792 = vmatpush1.msra.mxu0 0.0
      %793 = vmatprep.subr.mxu0 0.0
      %794 = vmatpush1.msra.mxu0 0.0
      %795 = vmatprep.mubr.f32.mxu0 0.0
      %v796 = vand.u32 %v636, 4294901760
      %797 = vmatmul.mubr.f32.gmra.mrb[0].mxu0 %v796
      %v798 = vpop.f32.mrb[0].mxu0
      %v799 = vadd.f32 %v717, %v798
      %v800 = vpop.f32.mrb[0].mxu0
      %v801 = vadd.f32 %v719, %v800
      %802 = vdwg.mxu0
      %v803 = vand.u32 %v641, 4294901760
      %v804 = vsub.f32 %v641, %v803
      %805 = vmatprep.subr.mxu0 %v804
      %v806 = vand.u32 %v639, 4294901760
      %v807 = vsub.f32 %v639, %v806
      %808 = vmatpush1.msra.mxu0 %v807
      %809 = vmatprep.subr.mxu0 0.0
      %810 = vmatpush1.msra.mxu0 0.0
      %811 = vmatprep.subr.mxu0 0.0
      %812 = vmatpush1.msra.mxu0 0.0
      %813 = vmatprep.subr.mxu0 0.0
      %814 = vmatpush1.msra.mxu0 0.0
      %815 = vmatprep.subr.mxu0 0.0
      %816 = vmatpush1.msra.mxu0 0.0
      %817 = vmatprep.subr.mxu0 0.0
      %818 = vmatpush1.msra.mxu0 0.0
      %819 = vmatprep.subr.mxu0 0.0
      %820 = vmatpush1.msra.mxu0 0.0
      %821 = vmatprep.subr.mxu0 0.0
      %822 = vmatpush1.msra.mxu0 0.0
      %823 = vmatprep.subr.mxu0 0.0
      %824 = vmatpush1.msra.mxu0 0.0
      %825 = vmatprep.subr.mxu0 0.0
      %826 = vmatpush1.msra.mxu0 0.0
      %827 = vmatprep.subr.mxu0 0.0
      %828 = vmatpush1.msra.mxu0 0.0
      %829 = vmatprep.subr.mxu0 0.0
      %830 = vmatpush1.msra.mxu0 0.0
      %831 = vmatprep.subr.mxu0 0.0
      %832 = vmatpush1.msra.mxu0 0.0
      %833 = vmatprep.subr.mxu0 0.0
      %834 = vmatpush1.msra.mxu0 0.0
      %835 = vmatprep.subr.mxu0 0.0
      %836 = vmatpush1.msra.mxu0 0.0
      %837 = vmatprep.subr.mxu0 0.0
      %838 = vmatpush1.msra.mxu0 0.0
      %839 = vmatprep.subr.mxu0 0.0
      %840 = vmatpush1.msra.mxu0 0.0
      %841 = vmatprep.subr.mxu0 0.0
      %842 = vmatpush1.msra.mxu0 0.0
      %843 = vmatprep.subr.mxu0 0.0
      %844 = vmatpush1.msra.mxu0 0.0
      %845 = vmatprep.subr.mxu0 0.0
      %846 = vmatpush1.msra.mxu0 0.0
      %847 = vmatprep.subr.mxu0 0.0
      %848 = vmatpush1.msra.mxu0 0.0
      %849 = vmatprep.subr.mxu0 0.0
      %850 = vmatpush1.msra.mxu0 0.0
      %851 = vmatprep.subr.mxu0 0.0
      %852 = vmatpush1.msra.mxu0 0.0
      %853 = vmatprep.subr.mxu0 0.0
      %854 = vmatpush1.msra.mxu0 0.0
      %855 = vmatprep.subr.mxu0 0.0
      %856 = vmatpush1.msra.mxu0 0.0
      %857 = vmatprep.subr.mxu0 0.0
      %858 = vmatpush1.msra.mxu0 0.0
      %859 = vmatprep.subr.mxu0 0.0
      %860 = vmatpush1.msra.mxu0 0.0
      %861 = vmatprep.subr.mxu0 0.0
      %862 = vmatpush1.msra.mxu0 0.0
      %863 = vmatprep.subr.mxu0 0.0
      %864 = vmatpush1.msra.mxu0 0.0
      %865 = vmatprep.subr.mxu0 0.0
      %866 = vmatpush1.msra.mxu0 0.0
      %867 = vmatprep.subr.mxu0 0.0
      %868 = vmatpush1.msra.mxu0 0.0
      %869 = vmatprep.subr.mxu0 0.0
      %870 = vmatpush1.msra.mxu0 0.0
      %871 = vmatprep.mubr.f32.mxu0 0.0
      %v872 = vand.u32 %v636, 4294901760
      %v873 = vsub.f32 %v636, %v872
      %874 = vmatmul.mubr.f32.gmra.mrb[0].mxu0 %v873
      %v875 = vpop.f32.mrb[0].mxu0
      %v876 = vadd.f32 %v799, %v875
      %v877 = vpop.f32.mrb[0].mxu0
      %v878 = vadd.f32 %v801, %v877
      %879 = vdwg.mxu0
      %v880 = vand.u32 %v641, 4294901760
      %881 = vmatprep.subr.mxu0 %v880
      %v882 = vand.u32 %v639, 4294901760
      %883 = vmatpush1.msra.mxu0 %v882
      %884 = vmatprep.subr.mxu0 0.0
      %885 = vmatpush1.msra.mxu0 0.0
      %886 = vmatprep.subr.mxu0 0.0
      %887 = vmatpush1.msra.mxu0 0.0
      %888 = vmatprep.subr.mxu0 0.0
      %889 = vmatpush1.msra.mxu0 0.0
      %890 = vmatprep.subr.mxu0 0.0
      %891 = vmatpush1.msra.mxu0 0.0
      %892 = vmatprep.subr.mxu0 0.0
      %893 = vmatpush1.msra.mxu0 0.0
      %894 = vmatprep.subr.mxu0 0.0
      %895 = vmatpush1.msra.mxu0 0.0
      %896 = vmatprep.subr.mxu0 0.0
      %897 = vmatpush1.msra.mxu0 0.0
      %898 = vmatprep.subr.mxu0 0.0
      %899 = vmatpush1.msra.mxu0 0.0
      %900 = vmatprep.subr.mxu0 0.0
      %901 = vmatpush1.msra.mxu0 0.0
      %902 = vmatprep.subr.mxu0 0.0
      %903 = vmatpush1.msra.mxu0 0.0
      %904 = vmatprep.subr.mxu0 0.0
      %905 = vmatpush1.msra.mxu0 0.0
      %906 = vmatprep.subr.mxu0 0.0
      %907 = vmatpush1.msra.mxu0 0.0
      %908 = vmatprep.subr.mxu0 0.0
      %909 = vmatpush1.msra.mxu0 0.0
      %910 = vmatprep.subr.mxu0 0.0
      %911 = vmatpush1.msra.mxu0 0.0
      %912 = vmatprep.subr.mxu0 0.0
      %913 = vmatpush1.msra.mxu0 0.0
      %914 = vmatprep.subr.mxu0 0.0
      %915 = vmatpush1.msra.mxu0 0.0
      %916 = vmatprep.subr.mxu0 0.0
      %917 = vmatpush1.msra.mxu0 0.0
      %918 = vmatprep.subr.mxu0 0.0
      %919 = vmatpush1.msra.mxu0 0.0
      %920 = vmatprep.subr.mxu0 0.0
      %921 = vmatpush1.msra.mxu0 0.0
      %922 = vmatprep.subr.mxu0 0.0
      %923 = vmatpush1.msra.mxu0 0.0
      %924 = vmatprep.subr.mxu0 0.0
      %925 = vmatpush1.msra.mxu0 0.0
      %926 = vmatprep.subr.mxu0 0.0
      %927 = vmatpush1.msra.mxu0 0.0
      %928 = vmatprep.subr.mxu0 0.0
      %929 = vmatpush1.msra.mxu0 0.0
      %930 = vmatprep.subr.mxu0 0.0
      %931 = vmatpush1.msra.mxu0 0.0
      %932 = vmatprep.subr.mxu0 0.0
      %933 = vmatpush1.msra.mxu0 0.0
      %934 = vmatprep.subr.mxu0 0.0
      %935 = vmatpush1.msra.mxu0 0.0
      %936 = vmatprep.subr.mxu0 0.0
      %937 = vmatpush1.msra.mxu0 0.0
      %938 = vmatprep.subr.mxu0 0.0
      %939 = vmatpush1.msra.mxu0 0.0
      %940 = vmatprep.subr.mxu0 0.0
      %941 = vmatpush1.msra.mxu0 0.0
      %942 = vmatprep.subr.mxu0 0.0
      %943 = vmatpush1.msra.mxu0 0.0
      %944 = vmatprep.subr.mxu0 0.0
      %945 = vmatpush1.msra.mxu0 0.0
      %946 = vmatprep.mubr.f32.mxu0 0.0
      %v947 = vand.u32 %v636, 4294901760
      %v948 = vsub.f32 %v636, %v947
      %v949 = vand.u32 %v948, 4294901760
      %950 = vmatmul.mubr.f32.gmra.mrb[0].mxu0 %v949
      %v951 = vpop.f32.mrb[0].mxu0
      %v952 = vadd.f32 %v876, %v951
      %v953 = vpop.f32.mrb[0].mxu0
      %v954 = vadd.f32 %v878, %v953
      %955 = vdwg.mxu0
      %v956 = vand.u32 %v641, 4294901760
      %v957 = vsub.f32 %v641, %v956
      %v958 = vand.u32 %v957, 4294901760
      %959 = vmatprep.subr.mxu0 %v958
      %v960 = vand.u32 %v639, 4294901760
      %v961 = vsub.f32 %v639, %v960
      %v962 = vand.u32 %v961, 4294901760
      %963 = vmatpush1.msra.mxu0 %v962
      %964 = vmatprep.subr.mxu0 0.0
      %965 = vmatpush1.msra.mxu0 0.0
      %966 = vmatprep.subr.mxu0 0.0
      %967 = vmatpush1.msra.mxu0 0.0
      %968 = vmatprep.subr.mxu0 0.0
      %969 = vmatpush1.msra.mxu0 0.0
      %970 = vmatprep.subr.mxu0 0.0
      %971 = vmatpush1.msra.mxu0 0.0
      %972 = vmatprep.subr.mxu0 0.0
      %973 = vmatpush1.msra.mxu0 0.0
      %974 = vmatprep.subr.mxu0 0.0
      %975 = vmatpush1.msra.mxu0 0.0
      %976 = vmatprep.subr.mxu0 0.0
      %977 = vmatpush1.msra.mxu0 0.0
      %978 = vmatprep.subr.mxu0 0.0
      %979 = vmatpush1.msra.mxu0 0.0
      %980 = vmatprep.subr.mxu0 0.0
      %981 = vmatpush1.msra.mxu0 0.0
      %982 = vmatprep.subr.mxu0 0.0
      %983 = vmatpush1.msra.mxu0 0.0
      %984 = vmatprep.subr.mxu0 0.0
      %985 = vmatpush1.msra.mxu0 0.0
      %986 = vmatprep.subr.mxu0 0.0
      %987 = vmatpush1.msra.mxu0 0.0
      %988 = vmatprep.subr.mxu0 0.0
      %989 = vmatpush1.msra.mxu0 0.0
      %990 = vmatprep.subr.mxu0 0.0
      %991 = vmatpush1.msra.mxu0 0.0
      %992 = vmatprep.subr.mxu0 0.0
      %993 = vmatpush1.msra.mxu0 0.0
      %994 = vmatprep.subr.mxu0 0.0
      %995 = vmatpush1.msra.mxu0 0.0
      %996 = vmatprep.subr.mxu0 0.0
      %997 = vmatpush1.msra.mxu0 0.0
      %998 = vmatprep.subr.mxu0 0.0
      %999 = vmatpush1.msra.mxu0 0.0
      %1000 = vmatprep.subr.mxu0 0.0
      %1001 = vmatpush1.msra.mxu0 0.0
      %1002 = vmatprep.subr.mxu0 0.0
      %1003 = vmatpush1.msra.mxu0 0.0
      %1004 = vmatprep.subr.mxu0 0.0
      %1005 = vmatpush1.msra.mxu0 0.0
      %1006 = vmatprep.subr.mxu0 0.0
      %1007 = vmatpush1.msra.mxu0 0.0
      %1008 = vmatprep.subr.mxu0 0.0
      %1009 = vmatpush1.msra.mxu0 0.0
      %1010 = vmatprep.subr.mxu0 0.0
      %1011 = vmatpush1.msra.mxu0 0.0
      %1012 = vmatprep.subr.mxu0 0.0
      %1013 = vmatpush1.msra.mxu0 0.0
      %1014 = vmatprep.subr.mxu0 0.0
      %1015 = vmatpush1.msra.mxu0 0.0
      %1016 = vmatprep.subr.mxu0 0.0
      %1017 = vmatpush1.msra.mxu0 0.0
      %1018 = vmatprep.subr.mxu0 0.0
      %1019 = vmatpush1.msra.mxu0 0.0
      %1020 = vmatprep.subr.mxu0 0.0
      %1021 = vmatpush1.msra.mxu0 0.0
      %1022 = vmatprep.subr.mxu0 0.0
      %1023 = vmatpush1.msra.mxu0 0.0
      %1024 = vmatprep.subr.mxu0 0.0
      %1025 = vmatpush1.msra.mxu0 0.0
      %1026 = vmatprep.mubr.f32.mxu0 0.0
      %v1027 = vand.u32 %v636, 4294901760
      %1028 = vmatmul.mubr.f32.gmra.mrb[0].mxu0 %v1027
      %v1029 = vpop.f32.mrb[0].mxu0
      %v1030 = vadd.f32 %v952, %v1029
      %v1031 = vpop.f32.mrb[0].mxu0
      %v1032 = vadd.f32 %v954, %v1031
      %1033 = vdwg.mxu0
      %v1034 = vand.u32 %v641, 4294901760
      %1035 = vmatprep.subr.mxu0 %v1034
      %v1036 = vand.u32 %v639, 4294901760
      %1037 = vmatpush1.msra.mxu0 %v1036
      %1038 = vmatprep.subr.mxu0 0.0
      %1039 = vmatpush1.msra.mxu0 0.0
      %1040 = vmatprep.subr.mxu0 0.0
      %1041 = vmatpush1.msra.mxu0 0.0
      %1042 = vmatprep.subr.mxu0 0.0
      %1043 = vmatpush1.msra.mxu0 0.0
      %1044 = vmatprep.subr.mxu0 0.0
      %1045 = vmatpush1.msra.mxu0 0.0
      %1046 = vmatprep.subr.mxu0 0.0
      %1047 = vmatpush1.msra.mxu0 0.0
      %1048 = vmatprep.subr.mxu0 0.0
      %1049 = vmatpush1.msra.mxu0 0.0
      %1050 = vmatprep.subr.mxu0 0.0
      %1051 = vmatpush1.msra.mxu0 0.0
      %1052 = vmatprep.subr.mxu0 0.0
      %1053 = vmatpush1.msra.mxu0 0.0
      %1054 = vmatprep.subr.mxu0 0.0
      %1055 = vmatpush1.msra.mxu0 0.0
      %1056 = vmatprep.subr.mxu0 0.0
      %1057 = vmatpush1.msra.mxu0 0.0
      %1058 = vmatprep.subr.mxu0 0.0
      %1059 = vmatpush1.msra.mxu0 0.0
      %1060 = vmatprep.subr.mxu0 0.0
      %1061 = vmatpush1.msra.mxu0 0.0
      %1062 = vmatprep.subr.mxu0 0.0
      %1063 = vmatpush1.msra.mxu0 0.0
      %1064 = vmatprep.subr.mxu0 0.0
      %1065 = vmatpush1.msra.mxu0 0.0
      %1066 = vmatprep.subr.mxu0 0.0
      %1067 = vmatpush1.msra.mxu0 0.0
      %1068 = vmatprep.subr.mxu0 0.0
      %1069 = vmatpush1.msra.mxu0 0.0
      %1070 = vmatprep.subr.mxu0 0.0
      %1071 = vmatpush1.msra.mxu0 0.0
      %1072 = vmatprep.subr.mxu0 0.0
      %1073 = vmatpush1.msra.mxu0 0.0
      %1074 = vmatprep.subr.mxu0 0.0
      %1075 = vmatpush1.msra.mxu0 0.0
      %1076 = vmatprep.subr.mxu0 0.0
      %1077 = vmatpush1.msra.mxu0 0.0
      %1078 = vmatprep.subr.mxu0 0.0
      %1079 = vmatpush1.msra.mxu0 0.0
      %1080 = vmatprep.subr.mxu0 0.0
      %1081 = vmatpush1.msra.mxu0 0.0
      %1082 = vmatprep.subr.mxu0 0.0
      %1083 = vmatpush1.msra.mxu0 0.0
      %1084 = vmatprep.subr.mxu0 0.0
      %1085 = vmatpush1.msra.mxu0 0.0
      %1086 = vmatprep.subr.mxu0 0.0
      %1087 = vmatpush1.msra.mxu0 0.0
      %1088 = vmatprep.subr.mxu0 0.0
      %1089 = vmatpush1.msra.mxu0 0.0
      %1090 = vmatprep.subr.mxu0 0.0
      %1091 = vmatpush1.msra.mxu0 0.0
      %1092 = vmatprep.subr.mxu0 0.0
      %1093 = vmatpush1.msra.mxu0 0.0
      %1094 = vmatprep.subr.mxu0 0.0
      %1095 = vmatpush1.msra.mxu0 0.0
      %1096 = vmatprep.subr.mxu0 0.0
      %1097 = vmatpush1.msra.mxu0 0.0
      %1098 = vmatprep.subr.mxu0 0.0
      %1099 = vmatpush1.msra.mxu0 0.0
      %1100 = vmatprep.mubr.f32.mxu0 0.0
      %v1101 = vand.u32 %v636, 4294901760
      %1102 = vmatmul.mubr.f32.gmra.mrb[0].mxu0 %v1101
      %v1103 = vpop.f32.mrb[0].mxu0
      %v1104 = vadd.f32 %v1030, %v1103
      %v1105 = vpop.f32.mrb[0].mxu0
      %v1106 = vadd.f32 %v1032, %v1105
      %1107 = vdwg.mxu0
      %v1108 = vstv %s146
      %v1109 = vmul.f32 %v1108, %v1104
      %v1110 = vmul.f32 %v1108, %v1106
      %v1111 = vadd.f32 %v1109, %v145
      %v1112 = vadd.f32 %v1110, %v148
      %v1115 = vcombine.low %v1111, %v1112
      %1117 = vst [vmem:[%s144] sm:$0xff] %v1115
      %p1118 = scmp.lt.s32.totalorder %s14, 1
      %s1119 = scalar_select %p1118, %s14, 1
      %s1120 = smul.addr %s1119, 2
      %s1121 = smul.addr %s1120, 4
      %s1122 = scalar_lea.vmem %s2, %s1121
      // Predicated region
      $region29: #{channel_attention_forward.1} parent=27 // pred_check
        %p1123 = pneg %p79
      $region30: #{channel_attention_forward.1} parent=27 // pred_check_branch
        %1125 = sbr.rel (%p1123) target = $region32
      $region31: #{channel_attention_forward.1} parent=27 // pred_region
        _
      $region32: #{channel_attention_forward.1} parent=27 // pred_fallthru
        _
    $region28: #{channel_attention_forward.1} parent=5 // pred_fallthru
      _
    %p1126 = scmp.le.s32.totalorder 2, %s9
    // Predicated region
    $region33: #{channel_attention_forward.1} parent=5 // pred_check
      %p1127 = pneg %p1126
    $region34: #{channel_attention_forward.1} parent=5 // pred_check_branch
      %1129 = sbr.rel (%p1127) target = $region36
    $region35: #{channel_attention_forward.1} parent=5 // pred_region
      %s1130 = ssub.s32 %s9, 2
      // Predicated region
      $region37: #{channel_attention_forward.1} parent=35 // pred_check
        %p1131 = pneg %p85
      $region38: #{channel_attention_forward.1} parent=35 // pred_check_branch
        %1133 = sbr.rel (%p1131) target = $region40
      $region39: #{channel_attention_forward.1} parent=35 // pred_region
        %p1134 = scmp.lt.s32.totalorder %s15, 1
        %s1135 = scalar_select %p1134, %s15, 1
        %s1136 = smul.addr %s1135, 2
        %s1137 = smul.addr %s1136, 4
        %s1138 = scalar_lea.vmem %s2, %s1137
      $region40: #{channel_attention_forward.1} parent=35 // pred_fallthru
        _
    $region36: #{channel_attention_forward.1} parent=5 // pred_fallthru
      _
  $region6: #{channel_attention_forward.1} parent=0 // loop_footer
    %s13 = sadd.s32 1, %s9
  $region7: #{channel_attention_forward.1} parent=0 // loop_footer_branch
    %8 = sbr.rel target = $region3
  $region8: #{channel_attention_forward.1} parent=0 // loop_exit
    _

</llo_original>
